<compile_context>
chip_gen: v7x
topology: tpu7x:2x2x1
jax: 0.10.0
libtpu: 0.0.40
codegen_flags: <defaults>
</compile_context>

<pallas_src>
import functools

import jax
import jax.numpy as jnp
from jax import lax
from jax.experimental import pallas as pl
from jax.experimental.pallas import tpu as pltpu


def _round_up(x, m):
    return ((x + m - 1) // m) * m


def _proj_relu_kernel(x_ref, w_ref, b_ref, o_ref, *, compute_dtype):
    # x_ref: [tm, K]   streamed activation tile (input dtype)
    # w_ref: [K,  Np]  resident weight (compute_dtype), pre-transposed [K, N]
    # b_ref: [1,  Np]  resident f32 bias
    # o_ref: [tm, Np]  output tile (input dtype)
    x = x_ref[...].astype(compute_dtype)
    acc = jnp.dot(x, w_ref[...], preferred_element_type=jnp.float32)
    o_ref[...] = jnp.maximum(acc + b_ref[...], 0.0).astype(o_ref.dtype)


def _proj_relu(x_cat, w_t, bias, compute_dtype):
    """relu(x_cat @ w_t + bias) with a 1-D M grid and VMEM-resident weight.

    x_cat: [M, K]      (K = factor * F)
    w_t:   [K, N]      (torch weight already transposed to [in, out])
    bias:  [N]
    """
    M, K = x_cat.shape
    N = w_t.shape[1]
    Np = _round_up(N, 128)          # lane-dense output width (unmasked vst)

    # Fixed large tm; never divisibility-derived.  Keep >=2 grid steps when M
    # allows it so v7x can split the parallel M axis across its 2 TensorCores.
    if M >= 512:
        tm, Mp, x_p = 256, M, x_cat
    elif M >= 256:
        tm, Mp, x_p = 128, M, x_cat
    else:
        Mp = _round_up(M, 8)        # tiny (<8 row) pad only; single grid step
        tm = Mp
        x_p = jnp.pad(x_cat, ((0, Mp - M), (0, 0))) if Mp != M else x_cat

    # Weight: cast once (small, static param) and pad N to lane-dense Np.
    w_p = w_t.astype(compute_dtype)
    if Np != N:
        w_p = jnp.pad(w_p, ((0, 0), (0, Np - N)))
    b_p = bias.astype(jnp.float32).reshape(1, N)
    if Np != N:
        b_p = jnp.pad(b_p, ((0, 0), (0, Np - N)))

    x_item = jnp.dtype(x_cat.dtype).itemsize
    w_item = jnp.dtype(compute_dtype).itemsize

    # VMEM budget: double-buffered x/out tiles + the resident weight + bias.
    vmem_needed = (2 * tm * K * x_item
                   + 2 * K * Np * w_item
                   + 2 * tm * Np * x_item
                   + 2 * Np * 4
                   + (2 << 20))
    vmem_limit = int(max(32 << 20, min(vmem_needed, 64 << 20)))

    cost = pl.CostEstimate(
        flops=2 * M * Np * K,
        transcendentals=0,
        bytes_accessed=(M * K * x_item + K * Np * w_item
                        + M * Np * x_item + Np * 4),
    )

    grid = (pl.cdiv(Mp, tm),)

    out = pl.pallas_call(
        functools.partial(_proj_relu_kernel, compute_dtype=compute_dtype),
        out_shape=jax.ShapeDtypeStruct((Mp, Np), x_cat.dtype),
        grid_spec=pltpu.PrefetchScalarGridSpec(
            num_scalar_prefetch=0,
            grid=grid,
            in_specs=[
                pl.BlockSpec((tm, K), lambda i: (i, 0)),    # streamed activations
                pl.BlockSpec((K, Np), lambda i: (0, 0)),    # resident weight [K, Np]
                pl.BlockSpec((1, Np), lambda i: (0, 0)),    # resident f32 bias
            ],
            out_specs=pl.BlockSpec((tm, Np), lambda i: (i, 0)),
        ),
        compiler_params=pltpu.CompilerParams(
            dimension_semantics=("parallel",),
            vmem_limit_bytes=vmem_limit,
        ),
        cost_estimate=cost,
    )(x_p, w_p, b_p)

    if (Mp, Np) != (M, N):
        out = out[:M, :N]
    return out


@functools.partial(jax.jit,
                   static_argnames=("subsampling_factor", "compute_dtype"))
def concat_subsampler_forward(xs, xlens, weight, bias, subsampling_factor,
                              compute_dtype=jnp.bfloat16):
    """xs: [B, T, F], xlens: [B] int32.

    weight: [F, F * subsampling_factor]  (torch nn.Linear layout [out, in])
    bias:   [F]
    compute_dtype: MXU operand dtype (bf16 default; f32 for exact torch math).
    Returns (ys [B, T', F], xlens' [B]).
    """
    factor = subsampling_factor
    if factor == 1:
        return xs, xlens

    B, T, F = xs.shape
    Tp = T // factor
    if Tp == 0:
        # The PyTorch reference would crash on an empty concat list; fail loudly.
        raise ValueError(
            f"ConcatSubsampler requires T >= subsampling_factor (T={T}, "
            f"factor={factor}).")

    # Frame concatenation: pure metadata reshape under jit when T % factor == 0.
    x_cat = xs[:, : Tp * factor, :].reshape(B * Tp, factor * F)

    # Pre-transpose the (small, static) weight once to [K, N] so the kernel is
    # a plain NN contraction with no per-tile transposes.
    w_t = jnp.transpose(weight)

    ys = _proj_relu(x_cat, w_t, bias, compute_dtype).reshape(B, Tp, F)
    # TODO(synk): the PyTorch module returns xlens as a CPU IntTensor; here it
    # stays a device int32 array.
    new_xlens = jnp.maximum(1, xlens // factor).astype(jnp.int32)
    return ys, new_xlens


def _reference(xs, xlens, weight, bias, factor, compute_dtype):
    """Pure-JAX reference with the same operand rounding as the kernel."""
    B, T, F = xs.shape
    Tp = T // factor
    x_cat = xs[:, : Tp * factor, :].reshape(B, Tp, factor * F)
    x_c = x_cat.astype(compute_dtype).astype(jnp.float32)
    w_c = weight.astype(compute_dtype).astype(jnp.float32)
    y = jnp.maximum(
        jnp.einsum("btk,nk->btn", x_c, w_c,
                   precision=lax.Precision.HIGHEST)
        + bias.astype(jnp.float32),
        0.0,
    ).astype(xs.dtype)
    new_xlens = jnp.maximum(1, xlens // factor).astype(jnp.int32)
    return y, new_xlens


def _make_params(key, n_units, factor):
    k_w, k_b = jax.random.split(key)
    bound = 1.0 / (n_units * factor) ** 0.5
    weight = jax.random.uniform(
        k_w, (n_units, n_units * factor), minval=-bound, maxval=bound,
        dtype=jnp.float32)
    bias = jax.random.uniform(
        k_b, (n_units,), minval=-bound, maxval=bound, dtype=jnp.float32)
    return weight, bias


if __name__ == "__main__":
    key = jax.random.PRNGKey(0)
    k1, k2, k3, kp1, kp2, kp3 = jax.random.split(key, 6)
    factor = 4

    # --- Case 1: tiny shapes, T not divisible by factor, exact f32 compute ---
    B, T, F = 2, 10, 32
    xs = jax.random.normal(k1, (B, T, F), dtype=jnp.float32)
    xlens = jnp.array([10, 5], dtype=jnp.int32)
    weight, bias = _make_params(kp1, F, factor)

    ys, new_xlens = concat_subsampler_forward(
        xs, xlens, weight, bias, factor, compute_dtype=jnp.float32)
    ys = jax.block_until_ready(ys)
    new_xlens = jax.block_until_ready(new_xlens)

    ref_y, ref_len = _reference(xs, xlens, weight, bias, factor, jnp.float32)
    assert ys.shape == (B, T // factor, F)
    assert jnp.allclose(ys, ref_y, atol=1e-4, rtol=1e-4)
    assert [int(v) for v in new_xlens] == [int(v) for v in ref_len] == [2, 1]

    # --- Case 2: larger K (=1024), default bf16 MXU path, single M block -----
    B2, T2, F2 = 2, 48, 256
    xs2 = jax.random.normal(k2, (B2, T2, F2), dtype=jnp.float32)
    xlens2 = jnp.array([48, 30], dtype=jnp.int32)
    weight2, bias2 = _make_params(kp2, F2, factor)

    ys2, new_xlens2 = concat_subsampler_forward(
        xs2, xlens2, weight2, bias2, factor)
    ys2 = jax.block_until_ready(ys2)
    new_xlens2 = jax.block_until_ready(new_xlens2)

    ref_y2, ref_len2 = _reference(
        xs2, xlens2, weight2, bias2, factor, jnp.bfloat16)
    assert ys2.shape == (B2, T2 // factor, F2)
    assert jnp.allclose(ys2, ref_y2, atol=2e-3, rtol=2e-3)
    assert [int(v) for v in new_xlens2] == [int(v) for v in ref_len2] == [12, 7]

    # --- Case 3: M=300 -> multi-step 1-D grid with a partial last M block ----
    B3, T3, F3 = 3, 400, 128
    xs3 = jax.random.normal(k3, (B3, T3, F3), dtype=jnp.float32)
    xlens3 = jnp.array([400, 237, 100], dtype=jnp.int32)
    weight3, bias3 = _make_params(kp3, F3, factor)

    ys3, new_xlens3 = concat_subsampler_forward(
        xs3, xlens3, weight3, bias3, factor)
    ys3 = jax.block_until_ready(ys3)
    new_xlens3 = jax.block_until_ready(new_xlens3)

    ref_y3, ref_len3 = _reference(
        xs3, xlens3, weight3, bias3, factor, jnp.bfloat16)
    assert ys3.shape == (B3, T3 // factor, F3)
    assert jnp.allclose(ys3, ref_y3, atol=2e-3, rtol=2e-3)
    assert [int(v) for v in new_xlens3] == [int(v) for v in ref_len3] == [100, 59, 25]

    print("KERNEL_OK")
</pallas_src>

<mosaic_0001>
module attributes {stable_mosaic.version = 11 : i64} {
  func.func @_proj_relu_kernel(%arg0: i32, %arg1: memref<8x128xf32, #tpu.memory_space<vmem>>, %arg2: memref<128x128xf32, #tpu.memory_space<vmem>>, %arg3: memref<1x128xf32, #tpu.memory_space<vmem>>, %arg4: memref<8x128xf32, #tpu.memory_space<vmem>>) attributes {dimension_semantics = [#tpu.dimension_semantics<parallel>], iteration_bounds = array<i64: 1>, scalar_prefetch = 0 : i64, scratch_operands = 0 : i64, tpu.core_type = #tpu.core_type<tc>, window_params = [{transform_indices = @transform_0, window_bounds = array<i64: 8, 128>}, {pipeline_mode = #tpu.pipeline_mode<synchronous>, transform_indices = @transform_1, window_bounds = array<i64: 128, 128>}, {pipeline_mode = #tpu.pipeline_mode<synchronous>, transform_indices = @transform_2, window_bounds = array<i64: 1, 128>}, {transform_indices = @transform_3, window_bounds = array<i64: 8, 128>}]} {
    %c0 = arith.constant 0 : index
    %c0_0 = arith.constant 0 : index
    %0 = vector.load %arg1[%c0, %c0_0] : memref<8x128xf32, #tpu.memory_space<vmem>>, vector<8x128xf32>
    %c0_1 = arith.constant 0 : index
    %c0_2 = arith.constant 0 : index
    %1 = vector.load %arg2[%c0_1, %c0_2] : memref<128x128xf32, #tpu.memory_space<vmem>>, vector<128x128xf32>
    %cst = arith.constant dense<0.000000e+00> : vector<8x128xf32>
    %2 = tpu.matmul %0, %1, %cst {dimension_numbers = #tpu.dot_dimension_numbers<[1], [0], [0], [1], [0, 0, 1, 1], [], []>} : vector<8x128xf32>, vector<128x128xf32>, vector<8x128xf32> -> vector<8x128xf32>
    %c0_3 = arith.constant 0 : index
    %c0_4 = arith.constant 0 : index
    %3 = vector.load %arg3[%c0_3, %c0_4] : memref<1x128xf32, #tpu.memory_space<vmem>>, vector<1x128xf32>
    %4 = vector.broadcast %3 : vector<1x128xf32> to vector<8x128xf32>
    %5 = arith.addf %2, %4 : vector<8x128xf32>
    %cst_5 = arith.constant 0.000000e+00 : f32
    %6 = vector.broadcast %cst_5 : f32 to vector<8x128xf32>
    %7 = arith.maximumf %5, %6 : vector<8x128xf32>
    %c0_6 = arith.constant 0 : index
    %c0_7 = arith.constant 0 : index
    %8 = vector.load %arg4[%c0_6, %c0_7] : memref<8x128xf32, #tpu.memory_space<vmem>>, vector<8x128xf32>
    tpu.vector_store %arg4[%c0_6, %c0_7], %7 {strides = array<i32>} : memref<8x128xf32, #tpu.memory_space<vmem>>, vector<8x128xf32>,
    return
  }
  func.func @transform_0(%arg0: i32) -> (i32, i32) {
    %c0_i32 = arith.constant 0 : i32
    %c0_i32_0 = arith.constant 0 : i32
    return %arg0, %c0_i32 : i32, i32
  }
  func.func @transform_1(%arg0: i32) -> (i32, i32) {
    %c0_i32 = arith.constant 0 : i32
    %c0_i32_0 = arith.constant 0 : i32
    %c0_i32_1 = arith.constant 0 : i32
    return %c0_i32, %c0_i32_0 : i32, i32
  }
  func.func @transform_2(%arg0: i32) -> (i32, i32) {
    %c0_i32 = arith.constant 0 : i32
    %c0_i32_0 = arith.constant 0 : i32
    %c0_i32_1 = arith.constant 0 : i32
    return %c0_i32, %c0_i32_0 : i32, i32
  }
  func.func @transform_3(%arg0: i32) -> (i32, i32) {
    %c0_i32 = arith.constant 0 : i32
    %c0_i32_0 = arith.constant 0 : i32
    return %arg0, %c0_i32 : i32, i32
  }
}

</mosaic_0001>

<llo_original>
// kernel: concat_subsampler_forward.1
$region0: #{concat_subsampler_forward.1}
  #allocation0 [shape = 'u32[]', space=smem, size = 0x4, offset = 0x4, fixed_abs, tag = 'smem constant byte address 0x4 - core index']
  #allocation1 [shape = 'u32[144,128]{1,0:T(1,128)}', space=vmem, size = 0x12000, scoped, tag = 'internal scratch']
  %s0 = inlined_call_operand.vmem [shape: f32[8,128], index: 0, kind: input, shape index: {}]
  %s1 = inlined_call_operand.vmem [shape: f32[128,128], index: 1, kind: input, shape index: {}]
  %s2 = inlined_call_operand.vmem [shape: f32[1,128], index: 2, kind: input, shape index: {}]
  %s3 = inlined_call_operand.vmem [shape: f32[8,128], index: 3, kind: output, shape index: {}]
  %s4 = sld [smem:[#allocation0]]
  $region22: #{concat_subsampler_forward.1} parent=0
    _
  %s6 = ssub.s32 1, %s4
  %s7 = scalar_select 0, %s6, %s4
  // Predicated region
  $region2: #{concat_subsampler_forward.1} parent=0 // pred_check
    _
  $region3: #{concat_subsampler_forward.1} parent=0 // pred_check_branch
    %9 = sbr.rel (0) target = $region5
  $region4: #{concat_subsampler_forward.1} parent=0 // pred_region
    _
  $region5: #{concat_subsampler_forward.1} parent=0 // pred_fallthru
    _
  // Predicated region
  $region6: #{concat_subsampler_forward.1} parent=0 // pred_check
    _
  $region7: #{concat_subsampler_forward.1} parent=0 // pred_check_branch
    %11 = sbr.rel (0) target = $region9
  $region8: #{concat_subsampler_forward.1} parent=0 // pred_region
    _
  $region9: #{concat_subsampler_forward.1} parent=0 // pred_fallthru
    _
  // Predicated region
  $region10: #{concat_subsampler_forward.1} parent=0 // pred_check
    _
  $region11: #{concat_subsampler_forward.1} parent=0 // pred_check_branch
    %13 = sbr.rel (0) target = $region13
  $region12: #{concat_subsampler_forward.1} parent=0 // pred_region
    _
  $region13: #{concat_subsampler_forward.1} parent=0 // pred_fallthru
    _
  %v14 = vld [vmem:[%s0] sm:$0xff]
  %v15 = vld [vmem:[%s1] sm:$0xff]
  %v16 = vld [vmem:[%s1 + $0x8] sm:$0xff]
  %v17 = vld [vmem:[%s1 + $0x10] sm:$0xff]
  %v18 = vld [vmem:[%s1 + $0x18] sm:$0xff]
  %v19 = vld [vmem:[%s1 + $0x20] sm:$0xff]
  %v20 = vld [vmem:[%s1 + $0x28] sm:$0xff]
  %v21 = vld [vmem:[%s1 + $0x30] sm:$0xff]
  %v22 = vld [vmem:[%s1 + $0x38] sm:$0xff]
  %v23 = vld [vmem:[%s1 + $0x40] sm:$0xff]
  %v24 = vld [vmem:[%s1 + $0x48] sm:$0xff]
  %v25 = vld [vmem:[%s1 + $0x50] sm:$0xff]
  %v26 = vld [vmem:[%s1 + $0x58] sm:$0xff]
  %v27 = vld [vmem:[%s1 + $0x60] sm:$0xff]
  %v28 = vld [vmem:[%s1 + $0x68] sm:$0xff]
  %v29 = vld [vmem:[%s1 + $0x70] sm:$0xff]
  %v30 = vld [vmem:[%s1 + $0x78] sm:$0xff]
  %v31 = vld [vmem:[%s2] sm:$0x1]
  %v33 = vlaneseq
  %v34 = vshrl.u32 %v33, 7
  %v35 = vsub.s32 0, %v34
  %v36 = vrot.slane %v31, %v35
  %38 = vmatprep.subr.mxu0 0.0
  %39 = vmatpush1.msra.mxu0 %v15
  %40 = vmatprep.subr.mxu0 0.0
  %41 = vmatpush1.msra.mxu0 %v16
  %42 = vmatprep.subr.mxu0 0.0
  %43 = vmatpush1.msra.mxu0 %v17
  %44 = vmatprep.subr.mxu0 0.0
  %45 = vmatpush1.msra.mxu0 %v18
  %46 = vmatprep.subr.mxu0 0.0
  %47 = vmatpush1.msra.mxu0 %v19
  %48 = vmatprep.subr.mxu0 0.0
  %49 = vmatpush1.msra.mxu0 %v20
  %50 = vmatprep.subr.mxu0 0.0
  %51 = vmatpush1.msra.mxu0 %v21
  %52 = vmatprep.subr.mxu0 0.0
  %53 = vmatpush1.msra.mxu0 %v22
  %54 = vmatprep.subr.mxu0 0.0
  %55 = vmatpush1.msra.mxu0 %v23
  %56 = vmatprep.subr.mxu0 0.0
  %57 = vmatpush1.msra.mxu0 %v24
  %58 = vmatprep.subr.mxu0 0.0
  %59 = vmatpush1.msra.mxu0 %v25
  %60 = vmatprep.subr.mxu0 0.0
  %61 = vmatpush1.msra.mxu0 %v26
  %62 = vmatprep.subr.mxu0 0.0
  %63 = vmatpush1.msra.mxu0 %v27
  %64 = vmatprep.subr.mxu0 0.0
  %65 = vmatpush1.msra.mxu0 %v28
  %66 = vmatprep.subr.mxu0 0.0
  %67 = vmatpush1.msra.mxu0 %v29
  %68 = vmatprep.subr.mxu0 0.0
  %69 = vmatpush1.msra.mxu0 %v30
  %70 = vmatprep.subr.mxu0 0.0
  %71 = vmatpush1.msra.mxu0 0.0
  %72 = vmatprep.subr.mxu0 0.0
  %73 = vmatpush1.msra.mxu0 0.0
  %74 = vmatprep.subr.mxu0 0.0
  %75 = vmatpush1.msra.mxu0 0.0
  %76 = vmatprep.subr.mxu0 0.0
  %77 = vmatpush1.msra.mxu0 0.0
  %78 = vmatprep.subr.mxu0 0.0
  %79 = vmatpush1.msra.mxu0 0.0
  %80 = vmatprep.subr.mxu0 0.0
  %81 = vmatpush1.msra.mxu0 0.0
  %82 = vmatprep.subr.mxu0 0.0
  %83 = vmatpush1.msra.mxu0 0.0
  %84 = vmatprep.subr.mxu0 0.0
  %85 = vmatpush1.msra.mxu0 0.0
  %86 = vmatprep.subr.mxu0 0.0
  %87 = vmatpush1.msra.mxu0 0.0
  %88 = vmatprep.subr.mxu0 0.0
  %89 = vmatpush1.msra.mxu0 0.0
  %90 = vmatprep.subr.mxu0 0.0
  %91 = vmatpush1.msra.mxu0 0.0
  %92 = vmatprep.subr.mxu0 0.0
  %93 = vmatpush1.msra.mxu0 0.0
  %94 = vmatprep.subr.mxu0 0.0
  %95 = vmatpush1.msra.mxu0 0.0
  %96 = vmatprep.subr.mxu0 0.0
  %97 = vmatpush1.msra.mxu0 0.0
  %98 = vmatprep.subr.mxu0 0.0
  %99 = vmatpush1.msra.mxu0 0.0
  %100 = vmatprep.subr.mxu0 0.0
  %101 = vmatpush1.msra.mxu0 0.0
  %102 = vmatprep.mubr.f32.mxu0 0.0
  %103 = vmatmul.mubr.f32.gmra.mrb[0].mxu0 %v14
  %v104 = vpop.f32.mrb[0].mxu0
  %v105 = vadd.f32 %v36, %v104
  %v106 = vpop.f32.mrb[0].mxu0
  %107 = vdwg.mxu0
  %v108 = vmax.f32 %v105, 0.0
  %109 = vst [vmem:[%s3] sm:$0xff] %v108
  // Predicated region
  $region14: #{concat_subsampler_forward.1} parent=0 // pred_check
    _
  $region15: #{concat_subsampler_forward.1} parent=0 // pred_check_branch
    %111 = sbr.rel (0) target = $region17
  $region16: #{concat_subsampler_forward.1} parent=0 // pred_region
    _
  $region17: #{concat_subsampler_forward.1} parent=0 // pred_fallthru
    _
  // Predicated region
  $region18: #{concat_subsampler_forward.1} parent=0 // pred_check
    _
  $region19: #{concat_subsampler_forward.1} parent=0 // pred_check_branch
    %113 = sbr.rel (0) target = $region21
  $region20: #{concat_subsampler_forward.1} parent=0 // pred_region
    _
  $region21: #{concat_subsampler_forward.1} parent=0 // pred_fallthru
    _

</llo_original>
